<compile_context>
chip_gen: v6e
topology: v6e:2x2x1
jax: 0.10.0
libtpu: 0.0.40
codegen_flags: <defaults>
</compile_context>

<pallas_src>
import jax
import jax.numpy as jnp
from jax.experimental import pallas as pl
from jax.experimental.pallas import tpu as pltpu


def _round_up(x, m):
    return ((x + m - 1) // m) * m


def _vmem_capacity_bytes():
    # Physical VMEM per TensorCore: 128 MiB on v5e/v6e, 64 MiB on v7x.
    try:
        return int(pltpu.get_tpu_info().vmem_capacity_bytes)
    except Exception:
        return 64 * 1024 * 1024  # conservative (v7x-safe) default


def _choose_tiles(B, R, L, itemsize, vmem_phys, target_step_bytes):
    """Pick (batch_tile, reduction_chunk) from a per-step byte target and a VMEM cap.

    Each grid step streams 2 * tb * rc * L * itemsize bytes (V_A + V_B).  Multi-MiB
    steps amortize the ~0.35us/step overhead; the double-buffered plan stays under
    ~70% of physical VMEM (v7x's 64 MiB is the binding case).
    """
    plan_cap = int(0.70 * vmem_phys)
    stream_cap = max(2 * 1024 * 1024, plan_cap - 4 * 1024 * 1024)
    step_budget = max(64 * 1024, min(int(target_step_bytes), stream_cap // 2))

    row_bytes = 2 * R * L * itemsize              # both inputs, one batch row, full R
    if 8 * row_bytes <= step_budget:
        rc = R                                    # full reduction per step; tile batch only
        tb = max(8, int(step_budget // row_bytes))
    else:
        tb = 8                                    # chunk the reduction axis
        max_rc = max(8, (int(step_budget // (2 * tb * L * itemsize)) // 8) * 8)
        rc = 0
        d = min(max_rc, (R // 8) * 8)
        while d >= 8:
            if R % d == 0:                        # rc must divide R (partial reduction
                rc = d                            # blocks would corrupt the accumulator)
                break
            d -= 8
        if rc == 0:
            # TODO(synk): R has no multiple-of-8 divisor within the budget; fall back
            # to a single full-R chunk (may exceed the per-step byte target).
            rc = R

    # Clamp / align the batch tile; ensure >= 2 batch steps when B allows (v7x megacore).
    if tb >= B:
        tb = B
        if B >= 16:
            tb = _round_up(pl.cdiv(B, 2), 8)
    else:
        tb = max(8, (tb // 8) * 8)
    return tb, rc


def aggregate_kernel(va_ref, vb_ref, w1a_ref, w1b_ref, b1_ref,
                     w2_ref, b2_ref, w3_ref, b3_ref, out_ref,
                     sa_acc, sb_acc):
    """One (batch tile, reduction chunk) grid step.

    va_ref / vb_ref : (TB, RC, L) slab of V_A / V_B (RC reduction rows, L lanes).
    w1a_ref/w1b_ref : (L, H)      first-layer weights, pre-split (and pre-tiled along
                                  L when the inputs are lane-packed).
    sa_acc / sb_acc : (TB, L) f32 scratch accumulators (persist across the r axis).
    """
    r = pl.program_id(1)

    @pl.when(r == 0)
    def _():
        sa_acc[...] = jnp.zeros_like(sa_acc)
        sb_acc[...] = jnp.zeros_like(sb_acc)

    # Sequence-sum reduction; accumulate in f32 (inputs may be bf16).
    sa_acc[...] += jnp.sum(va_ref[...].astype(jnp.float32), axis=1)
    sb_acc[...] += jnp.sum(vb_ref[...].astype(jnp.float32), axis=1)

    @pl.when(r == pl.num_programs(1) - 1)
    def _():
        # First Linear of `h`:  cat([sA, sB]) @ W1  ==  sA @ W1a + sB @ W1b
        # (no lane-axis concatenate / relayout).
        h1 = (jnp.dot(sa_acc[...], w1a_ref[...], preferred_element_type=jnp.float32)
              + jnp.dot(sb_acc[...], w1b_ref[...], preferred_element_type=jnp.float32)
              + b1_ref[...])
        h1 = jnp.maximum(h1, 0.0)

        h2 = jnp.dot(h1, w2_ref[...], preferred_element_type=jnp.float32) + b2_ref[...]
        h2 = jnp.maximum(h2, 0.0)

        y = jnp.dot(h2, w3_ref[...], preferred_element_type=jnp.float32) + b3_ref[...]
        out_ref[...] = y.astype(out_ref.dtype)


def aggregate_forward(v_a, v_b, w1, b1, w2, b2, w3, b3, *,
                      target_step_bytes=8 * 1024 * 1024):
    """V_A, V_B: (B, S, F) in the producer's dtype (f32 or bf16; no wrapper cast).
    Weights stored transposed (in, out).  Returns (B, num_outputs) f32.
    """
    B, S, F = v_a.shape
    assert v_b.shape == (B, S, F)
    assert w1.shape[0] == 2 * F
    H = w1.shape[1]
    num_outputs = w3.shape[1]
    assert w2.shape == (H, H) and w3.shape[0] == H

    # Defensive: accept 1D biases (PyTorch state-dict style) as (1, n).
    b1 = b1.reshape(1, -1)
    b2 = b2.reshape(1, -1)
    b3 = b3.reshape(1, -1)

    # Split W1 so the kernel never concatenates along the lane axis.
    w1a = w1[:F]          # (F, H)
    w1b = w1[F:]          # (F, H)

    # Lane-dense packing: row-major (S, F) slab viewed as 128-lane rows (free view);
    # W1a/W1b repeated so packed per-lane-group sums multiply directly (re-association).
    if F < 128 and (128 % F == 0) and ((S * F) % 128 == 0):
        reps = 128 // F
        v_a = v_a.reshape(B, (S * F) // 128, 128)
        v_b = v_b.reshape(B, (S * F) // 128, 128)
        w1a = jnp.tile(w1a, (reps, 1))     # (128, H)
        w1b = jnp.tile(w1b, (reps, 1))     # (128, H)
    R, L = v_a.shape[1], v_a.shape[2]
    itemsize = jnp.dtype(v_a.dtype).itemsize

    vmem_phys = _vmem_capacity_bytes()
    tb, rc = _choose_tiles(B, R, L, itemsize, vmem_phys, target_step_bytes)

    grid = (pl.cdiv(B, tb), R // rc)       # no wrapper pad; last batch tile may be partial

    v_spec = pl.BlockSpec((tb, rc, L), lambda i, r: (i, r, 0))

    def const_spec(shape):
        # Whole (small) parameter resident in VMEM; same block every grid step.
        return pl.BlockSpec(shape, lambda i, r: (0,) * len(shape))

    params = (w1a, w1b, b1, w2, b2, w3, b3)
    params_bytes = sum(int(p.size) * jnp.dtype(p.dtype).itemsize for p in params)

    # Explicit VMEM plan: 2 pipeline buffers x V tiles + params + output + accumulators.
    tb_pad = _round_up(tb, 8)
    step_bytes = 2 * tb * rc * L * itemsize
    plan_bytes = (2 * step_bytes
                  + 2 * params_bytes
                  + 2 * tb_pad * 128 * 4
                  + 2 * tb_pad * max(L, 128) * 4)
    vmem_limit = int(min(max(plan_bytes + 8 * 2**20, 32 * 2**20),
                         int(0.85 * vmem_phys)))

    out = pl.pallas_call(
        aggregate_kernel,
        out_shape=jax.ShapeDtypeStruct((B, num_outputs), jnp.float32),
        grid_spec=pltpu.PrefetchScalarGridSpec(
            num_scalar_prefetch=0,
            grid=grid,
            in_specs=[v_spec, v_spec] + [const_spec(p.shape) for p in params],
            out_specs=pl.BlockSpec((tb, num_outputs), lambda i, r: (i, 0)),
            scratch_shapes=[pltpu.VMEM((tb, L), jnp.float32),
                            pltpu.VMEM((tb, L), jnp.float32)]),
        compiler_params=pltpu.CompilerParams(
            dimension_semantics=("parallel", "arbitrary"),
            vmem_limit_bytes=vmem_limit),
    )(v_a, v_b, *params)

    return out


def reference_forward(v_a, v_b, w1, b1, w2, b2, w3, b3):
    s_a = v_a.sum(axis=1)
    s_b = v_b.sum(axis=1)
    x = jnp.concatenate([s_a, s_b], axis=1)
    h1 = jnp.maximum(x @ w1 + b1.reshape(1, -1), 0.0)
    h2 = jnp.maximum(h1 @ w2 + b2.reshape(1, -1), 0.0)
    return h2 @ w3 + b3.reshape(1, -1)


if __name__ == "__main__":
    # Shapes consistent with the module (V_A/V_B come from Compare; F = num_hiddens).
    batch, seq, num_hiddens, num_outputs = 2, 8, 32, 3
    num_inputs_agg = 2 * num_hiddens

    key = jax.random.PRNGKey(0)
    (k_va, k_vb, k_w1, k_b1, k_w2, k_b2, k_w3, k_b3,
     k_va2, k_vb2, k_va3, k_vb3) = jax.random.split(key, 12)

    # Parameters stored as (in, out), i.e. PyTorch weight^T.
    w1 = jax.random.normal(k_w1, (num_inputs_agg, num_hiddens), jnp.float32) * 0.1
    b1 = jax.random.normal(k_b1, (1, num_hiddens), jnp.float32) * 0.1
    w2 = jax.random.normal(k_w2, (num_hiddens, num_hiddens), jnp.float32) * 0.1
    b2 = jax.random.normal(k_b2, (1, num_hiddens), jnp.float32) * 0.1
    w3 = jax.random.normal(k_w3, (num_hiddens, num_outputs), jnp.float32) * 0.1
    b3 = jax.random.normal(k_b3, (1, num_outputs), jnp.float32) * 0.1

    # --- Test 1: tiny f32 batch (single grid step, lane-packed reduction) ---
    v_a = jax.random.normal(k_va, (batch, seq, num_hiddens), dtype=jnp.float32)
    v_b = jax.random.normal(k_vb, (batch, seq, num_hiddens), dtype=jnp.float32)
    y = aggregate_forward(v_a, v_b, w1, b1, w2, b2, w3, b3)
    jax.block_until_ready(y)
    y_ref = reference_forward(v_a, v_b, w1, b1, w2, b2, w3, b3)
    assert y.shape == (batch, num_outputs)
    assert jnp.allclose(y, y_ref, atol=2e-2, rtol=2e-2), "f32 path mismatch vs reference"

    # --- Test 2: bf16 producer (no wrapper cast), partial last batch tile ---
    b2_batch = 24
    v_a2 = jax.random.normal(k_va2, (b2_batch, seq, num_hiddens), jnp.float32).astype(jnp.bfloat16)
    v_b2 = jax.random.normal(k_vb2, (b2_batch, seq, num_hiddens), jnp.float32).astype(jnp.bfloat16)
    y2 = aggregate_forward(v_a2, v_b2, w1, b1, w2, b2, w3, b3)
    jax.block_until_ready(y2)
    y2_ref = reference_forward(v_a2.astype(jnp.float32), v_b2.astype(jnp.float32),
                               w1, b1, w2, b2, w3, b3)
    assert y2.shape == (b2_batch, num_outputs)
    assert jnp.allclose(y2, y2_ref, atol=2e-2, rtol=2e-2), "bf16 path mismatch vs reference"

    # --- Test 3: forced reduction-axis chunking + multiple batch tiles ---
    b3_batch, seq3 = 16, 64
    v_a3 = jax.random.normal(k_va3, (b3_batch, seq3, num_hiddens), jnp.float32)
    v_b3 = jax.random.normal(k_vb3, (b3_batch, seq3, num_hiddens), jnp.float32)
    y3 = aggregate_forward(v_a3, v_b3, w1, b1, w2, b2, w3, b3,
                           target_step_bytes=64 * 1024)
    jax.block_until_ready(y3)
    y3_ref = reference_forward(v_a3, v_b3, w1, b1, w2, b2, w3, b3)
    assert y3.shape == (b3_batch, num_outputs)
    assert jnp.allclose(y3, y3_ref, atol=2e-2, rtol=2e-2), "chunked path mismatch vs reference"

    print("KERNEL_OK")
</pallas_src>

<mosaic_0001>
module attributes {stable_mosaic.version = 11 : i64} {
  func.func @aggregate_kernel(%arg0: i32, %arg1: i32, %arg2: memref<2x2x128xf32, #tpu.memory_space<vmem>>, %arg3: memref<2x2x128xf32, #tpu.memory_space<vmem>>, %arg4: memref<128x32xf32, #tpu.memory_space<vmem>>, %arg5: memref<128x32xf32, #tpu.memory_space<vmem>>, %arg6: memref<1x32xf32, #tpu.memory_space<vmem>>, %arg7: memref<32x32xf32, #tpu.memory_space<vmem>>, %arg8: memref<1x32xf32, #tpu.memory_space<vmem>>, %arg9: memref<32x3xf32, #tpu.memory_space<vmem>>, %arg10: memref<1x3xf32, #tpu.memory_space<vmem>>, %arg11: memref<2x3xf32, #tpu.memory_space<vmem>>, %arg12: memref<2x128xf32, #tpu.memory_space<vmem>>, %arg13: memref<2x128xf32, #tpu.memory_space<vmem>>) attributes {dimension_semantics = [#tpu.dimension_semantics<parallel>, #tpu.dimension_semantics<arbitrary>], iteration_bounds = array<i64: 1, 1>, scalar_prefetch = 0 : i64, scratch_operands = 2 : i64, tpu.core_type = #tpu.core_type<tc>, window_params = [{transform_indices = @transform_0, window_bounds = array<i64: 2, 2, 128>}, {transform_indices = @transform_1, window_bounds = array<i64: 2, 2, 128>}, {pipeline_mode = #tpu.pipeline_mode<synchronous>, transform_indices = @transform_2, window_bounds = array<i64: 128, 32>}, {pipeline_mode = #tpu.pipeline_mode<synchronous>, transform_indices = @transform_3, window_bounds = array<i64: 128, 32>}, {pipeline_mode = #tpu.pipeline_mode<synchronous>, transform_indices = @transform_4, window_bounds = array<i64: 1, 32>}, {pipeline_mode = #tpu.pipeline_mode<synchronous>, transform_indices = @transform_5, window_bounds = array<i64: 32, 32>}, {pipeline_mode = #tpu.pipeline_mode<synchronous>, transform_indices = @transform_6, window_bounds = array<i64: 1, 32>}, {pipeline_mode = #tpu.pipeline_mode<synchronous>, transform_indices = @transform_7, window_bounds = array<i64: 32, 3>}, {pipeline_mode = #tpu.pipeline_mode<synchronous>, transform_indices = @transform_8, window_bounds = array<i64: 1, 3>}, {transform_indices = @transform_9, window_bounds = array<i64: 2, 3>}]} {
    %c0_i32 = arith.constant 0 : i32
    %0 = arith.cmpi eq, %arg1, %c0_i32 : i32
    %1 = arith.extui %0 : i1 to i32
    %c0_i32_0 = arith.constant 0 : i32
    %2 = arith.cmpi ne, %1, %c0_i32_0 : i32
    scf.if %2 {
      %cst_17 = arith.constant 0.000000e+00 : f32
      %16 = vector.broadcast %cst_17 : f32 to vector<2x128xf32>
      %c0_18 = arith.constant 0 : index
      %c0_19 = arith.constant 0 : index
      %17 = vector.load %arg12[%c0_18, %c0_19] : memref<2x128xf32, #tpu.memory_space<vmem>>, vector<2x128xf32>
      tpu.vector_store %arg12[%c0_18, %c0_19], %16 {strides = array<i32>} : memref<2x128xf32, #tpu.memory_space<vmem>>, vector<2x128xf32>,
      %cst_20 = arith.constant 0.000000e+00 : f32
      %18 = vector.broadcast %cst_20 : f32 to vector<2x128xf32>
      %c0_21 = arith.constant 0 : index
      %c0_22 = arith.constant 0 : index
      %19 = vector.load %arg13[%c0_21, %c0_22] : memref<2x128xf32, #tpu.memory_space<vmem>>, vector<2x128xf32>
      tpu.vector_store %arg13[%c0_21, %c0_22], %18 {strides = array<i32>} : memref<2x128xf32, #tpu.memory_space<vmem>>, vector<2x128xf32>,
    } else {
    }
    %c0 = arith.constant 0 : index
    %c0_1 = arith.constant 0 : index
    %3 = vector.load %arg12[%c0, %c0_1] : memref<2x128xf32, #tpu.memory_space<vmem>>, vector<2x128xf32>
    %c0_2 = arith.constant 0 : index
    %c0_3 = arith.constant 0 : index
    %c0_4 = arith.constant 0 : index
    %4 = vector.load %arg2[%c0_2, %c0_3, %c0_4] : memref<2x2x128xf32, #tpu.memory_space<vmem>>, vector<2x2x128xf32>
    %cst = arith.constant dense<0.000000e+00> : vector<2x128xf32>
    %5 = vector.multi_reduction <add>, %4, %cst [1] : vector<2x2x128xf32> to vector<2x128xf32>
    %6 = arith.addf %3, %5 : vector<2x128xf32>
    %c0_5 = arith.constant 0 : index
    %c0_6 = arith.constant 0 : index
    %7 = vector.load %arg12[%c0_5, %c0_6] : memref<2x128xf32, #tpu.memory_space<vmem>>, vector<2x128xf32>
    tpu.vector_store %arg12[%c0_5, %c0_6], %6 {strides = array<i32>} : memref<2x128xf32, #tpu.memory_space<vmem>>, vector<2x128xf32>,
    %c0_7 = arith.constant 0 : index
    %c0_8 = arith.constant 0 : index
    %8 = vector.load %arg13[%c0_7, %c0_8] : memref<2x128xf32, #tpu.memory_space<vmem>>, vector<2x128xf32>
    %c0_9 = arith.constant 0 : index
    %c0_10 = arith.constant 0 : index
    %c0_11 = arith.constant 0 : index
    %9 = vector.load %arg3[%c0_9, %c0_10, %c0_11] : memref<2x2x128xf32, #tpu.memory_space<vmem>>, vector<2x2x128xf32>
    %cst_12 = arith.constant dense<0.000000e+00> : vector<2x128xf32>
    %10 = vector.multi_reduction <add>, %9, %cst_12 [1] : vector<2x2x128xf32> to vector<2x128xf32>
    %11 = arith.addf %8, %10 : vector<2x128xf32>
    %c0_13 = arith.constant 0 : index
    %c0_14 = arith.constant 0 : index
    %12 = vector.load %arg13[%c0_13, %c0_14] : memref<2x128xf32, #tpu.memory_space<vmem>>, vector<2x128xf32>
    tpu.vector_store %arg13[%c0_13, %c0_14], %11 {strides = array<i32>} : memref<2x128xf32, #tpu.memory_space<vmem>>, vector<2x128xf32>,
    %c0_i32_15 = arith.constant 0 : i32
    %13 = arith.cmpi eq, %arg1, %c0_i32_15 : i32
    %14 = arith.extui %13 : i1 to i32
    %c0_i32_16 = arith.constant 0 : i32
    %15 = arith.cmpi ne, %14, %c0_i32_16 : i32
    scf.if %15 {
      %c0_17 = arith.constant 0 : index
      %c0_18 = arith.constant 0 : index
      %16 = vector.load %arg12[%c0_17, %c0_18] : memref<2x128xf32, #tpu.memory_space<vmem>>, vector<2x128xf32>
      %c0_19 = arith.constant 0 : index
      %c0_20 = arith.constant 0 : index
      %17 = vector.load %arg4[%c0_19, %c0_20] : memref<128x32xf32, #tpu.memory_space<vmem>>, vector<128x32xf32>
      %cst_21 = arith.constant dense<0.000000e+00> : vector<2x32xf32>
      %18 = tpu.matmul %16, %17, %cst_21 {dimension_numbers = #tpu.dot_dimension_numbers<[1], [0], [0], [1], [0, 0, 1, 1], [], []>} : vector<2x128xf32>, vector<128x32xf32>, vector<2x32xf32> -> vector<2x32xf32>
      %c0_22 = arith.constant 0 : index
      %c0_23 = arith.constant 0 : index
      %19 = vector.load %arg13[%c0_22, %c0_23] : memref<2x128xf32, #tpu.memory_space<vmem>>, vector<2x128xf32>
      %c0_24 = arith.constant 0 : index
      %c0_25 = arith.constant 0 : index
      %20 = vector.load %arg5[%c0_24, %c0_25] : memref<128x32xf32, #tpu.memory_space<vmem>>, vector<128x32xf32>
      %cst_26 = arith.constant dense<0.000000e+00> : vector<2x32xf32>
      %21 = tpu.matmul %19, %20, %cst_26 {dimension_numbers = #tpu.dot_dimension_numbers<[1], [0], [0], [1], [0, 0, 1, 1], [], []>} : vector<2x128xf32>, vector<128x32xf32>, vector<2x32xf32> -> vector<2x32xf32>
      %22 = arith.addf %18, %21 : vector<2x32xf32>
      %c0_27 = arith.constant 0 : index
      %c0_28 = arith.constant 0 : index
      %23 = vector.load %arg6[%c0_27, %c0_28] : memref<1x32xf32, #tpu.memory_space<vmem>>, vector<1x32xf32>
      %24 = vector.broadcast %23 : vector<1x32xf32> to vector<2x32xf32>
      %25 = arith.addf %22, %24 : vector<2x32xf32>
      %cst_29 = arith.constant 0.000000e+00 : f32
      %26 = vector.broadcast %cst_29 : f32 to vector<2x32xf32>
      %27 = arith.maximumf %25, %26 : vector<2x32xf32>
      %c0_30 = arith.constant 0 : index
      %c0_31 = arith.constant 0 : index
      %28 = vector.load %arg7[%c0_30, %c0_31] : memref<32x32xf32, #tpu.memory_space<vmem>>, vector<32x32xf32>
      %cst_32 = arith.constant dense<0.000000e+00> : vector<2x32xf32>
      %29 = tpu.matmul %27, %28, %cst_32 {dimension_numbers = #tpu.dot_dimension_numbers<[1], [0], [0], [1], [0, 0, 1, 1], [], []>} : vector<2x32xf32>, vector<32x32xf32>, vector<2x32xf32> -> vector<2x32xf32>
      %c0_33 = arith.constant 0 : index
      %c0_34 = arith.constant 0 : index
      %30 = vector.load %arg8[%c0_33, %c0_34] : memref<1x32xf32, #tpu.memory_space<vmem>>, vector<1x32xf32>
      %31 = vector.broadcast %30 : vector<1x32xf32> to vector<2x32xf32>
      %32 = arith.addf %29, %31 : vector<2x32xf32>
      %cst_35 = arith.constant 0.000000e+00 : f32
      %33 = vector.broadcast %cst_35 : f32 to vector<2x32xf32>
      %34 = arith.maximumf %32, %33 : vector<2x32xf32>
      %c0_36 = arith.constant 0 : index
      %c0_37 = arith.constant 0 : index
      %35 = vector.load %arg9[%c0_36, %c0_37] : memref<32x3xf32, #tpu.memory_space<vmem>>, vector<32x3xf32>
      %cst_38 = arith.constant dense<0.000000e+00> : vector<2x3xf32>
      %36 = tpu.matmul %34, %35, %cst_38 {dimension_numbers = #tpu.dot_dimension_numbers<[1], [0], [0], [1], [0, 0, 1, 1], [], []>} : vector<2x32xf32>, vector<32x3xf32>, vector<2x3xf32> -> vector<2x3xf32>
      %c0_39 = arith.constant 0 : index
      %c0_40 = arith.constant 0 : index
      %37 = vector.load %arg10[%c0_39, %c0_40] : memref<1x3xf32, #tpu.memory_space<vmem>>, vector<1x3xf32>
      %38 = vector.broadcast %37 : vector<1x3xf32> to vector<2x3xf32>
      %39 = arith.addf %36, %38 : vector<2x3xf32>
      %c0_41 = arith.constant 0 : index
      %c0_42 = arith.constant 0 : index
      %40 = vector.load %arg11[%c0_41, %c0_42] : memref<2x3xf32, #tpu.memory_space<vmem>>, vector<2x3xf32>
      tpu.vector_store %arg11[%c0_41, %c0_42], %39 {strides = array<i32>} : memref<2x3xf32, #tpu.memory_space<vmem>>, vector<2x3xf32>,
    } else {
    }
    return
  }
  func.func @transform_0(%arg0: i32, %arg1: i32) -> (i32, i32, i32) {
    %c0_i32 = arith.constant 0 : i32
    %c0_i32_0 = arith.constant 0 : i32
    return %arg0, %arg1, %c0_i32 : i32, i32, i32
  }
  func.func @transform_1(%arg0: i32, %arg1: i32) -> (i32, i32, i32) {
    %c0_i32 = arith.constant 0 : i32
    %c0_i32_0 = arith.constant 0 : i32
    return %arg0, %arg1, %c0_i32 : i32, i32, i32
  }
  func.func @transform_2(%arg0: i32, %arg1: i32) -> (i32, i32) {
    %c0_i32 = arith.constant 0 : i32
    %c0_i32_0 = arith.constant 0 : i32
    %c0_i32_1 = arith.constant 0 : i32
    return %c0_i32, %c0_i32_0 : i32, i32
  }
  func.func @transform_3(%arg0: i32, %arg1: i32) -> (i32, i32) {
    %c0_i32 = arith.constant 0 : i32
    %c0_i32_0 = arith.constant 0 : i32
    %c0_i32_1 = arith.constant 0 : i32
    return %c0_i32, %c0_i32_0 : i32, i32
  }
  func.func @transform_4(%arg0: i32, %arg1: i32) -> (i32, i32) {
    %c0_i32 = arith.constant 0 : i32
    %c0_i32_0 = arith.constant 0 : i32
    %c0_i32_1 = arith.constant 0 : i32
    return %c0_i32, %c0_i32_0 : i32, i32
  }
  func.func @transform_5(%arg0: i32, %arg1: i32) -> (i32, i32) {
    %c0_i32 = arith.constant 0 : i32
    %c0_i32_0 = arith.constant 0 : i32
    %c0_i32_1 = arith.constant 0 : i32
    return %c0_i32, %c0_i32_0 : i32, i32
  }
  func.func @transform_6(%arg0: i32, %arg1: i32) -> (i32, i32) {
    %c0_i32 = arith.constant 0 : i32
    %c0_i32_0 = arith.constant 0 : i32
    %c0_i32_1 = arith.constant 0 : i32
    return %c0_i32, %c0_i32_0 : i32, i32
  }
  func.func @transform_7(%arg0: i32, %arg1: i32) -> (i32, i32) {
    %c0_i32 = arith.constant 0 : i32
    %c0_i32_0 = arith.constant 0 : i32
    %c0_i32_1 = arith.constant 0 : i32
    return %c0_i32, %c0_i32_0 : i32, i32
  }
  func.func @transform_8(%arg0: i32, %arg1: i32) -> (i32, i32) {
    %c0_i32 = arith.constant 0 : i32
    %c0_i32_0 = arith.constant 0 : i32
    %c0_i32_1 = arith.constant 0 : i32
    return %c0_i32, %c0_i32_0 : i32, i32
  }
  func.func @transform_9(%arg0: i32, %arg1: i32) -> (i32, i32) {
    %c0_i32 = arith.constant 0 : i32
    %c0_i32_0 = arith.constant 0 : i32
    return %arg0, %c0_i32 : i32, i32
  }
}

</mosaic_0001>

<llo_original>
// kernel: tpu_custom_call.1
$region0: #{tpu_custom_call.1}
  #allocation0 [shape = 'u32[]', space=smem, size = 0x4, offset = 0x4, fixed_abs, tag = 'smem constant byte address 0x4 - core index']
  #allocation1 [shape = 'u32[144,128]{1,0:T(1,128)}', space=vmem, size = 0x12000, scoped, tag = 'internal scratch']
  #allocation2 [shape = 'f32[2,128]{1,0:T(2,128)}', space=vmem, size = 0x400, scoped, tag = 'scratch operand']
  #allocation3 [shape = 'f32[2,128]{1,0:T(2,128)}', space=vmem, size = 0x400, scoped, tag = 'scratch operand']
  %s0 = inlined_call_operand.vmem [shape: f32[2,2,128], index: 0, kind: input, shape index: {}]
  %s1 = inlined_call_operand.vmem [shape: f32[2,2,128], index: 1, kind: input, shape index: {}]
  %s2 = inlined_call_operand.vmem [shape: f32[128,32], index: 2, kind: input, shape index: {}]
  %s3 = inlined_call_operand.vmem [shape: f32[128,32], index: 3, kind: input, shape index: {}]
  %s4 = inlined_call_operand.vmem [shape: f32[1,32], index: 4, kind: input, shape index: {}]
  %s5 = inlined_call_operand.vmem [shape: f32[32,32], index: 5, kind: input, shape index: {}]
  %s6 = inlined_call_operand.vmem [shape: f32[1,32], index: 6, kind: input, shape index: {}]
  %s7 = inlined_call_operand.vmem [shape: f32[32,3], index: 7, kind: input, shape index: {}]
  %s8 = inlined_call_operand.vmem [shape: f32[1,3], index: 8, kind: input, shape index: {}]
  %s9 = inlined_call_operand.hbm [shape: f32[2,3], index: 9, kind: output, shape index: {}]
  %s10 = sld [smem:[#allocation0]]
  $region54: #{tpu_custom_call.1} parent=0
    _
  %s12 = ssub.s32 1, %s10
  %s13 = scalar_select 0, %s12, %s10
  $region1: #{tpu_custom_call.1} parent=0
    #allocation4 [shape = 'u8[1024]{0}', space=vmem, size = 0x400, scoped, tag = 'output window, operand 0, single buffered']
    #allocation5 [shape = 's32[1]{0}', space=sflag, size = 0x4, scoped, tag = 'scoped memory for tpu_custom_call.1']
    %14 = vsyncpa [#allocation5], 0
    // Predicated region
    $region2: #{tpu_custom_call.1} parent=1 // pred_check
      _
    $region3: #{tpu_custom_call.1} parent=1 // pred_check_branch
      %16 = sbr.rel (0) target = $region5
    $region4: #{tpu_custom_call.1} parent=1 // pred_region
      _
    $region5: #{tpu_custom_call.1} parent=1 // pred_fallthru
      _
    // Predicated region
    $region6: #{tpu_custom_call.1} parent=1 // pred_check
      _
    $region7: #{tpu_custom_call.1} parent=1 // pred_check_branch
      %18 = sbr.rel (0) target = $region9
    $region8: #{tpu_custom_call.1} parent=1 // pred_region
      _
    $region9: #{tpu_custom_call.1} parent=1 // pred_fallthru
      _
    // Predicated region
    $region10: #{tpu_custom_call.1} parent=1 // pred_check
      _
    $region11: #{tpu_custom_call.1} parent=1 // pred_check_branch
      %20 = sbr.rel (0) target = $region13
    $region12: #{tpu_custom_call.1} parent=1 // pred_region
      _
    $region13: #{tpu_custom_call.1} parent=1 // pred_fallthru
      _
    // Predicated region
    $region14: #{tpu_custom_call.1} parent=1 // pred_check
      _
    $region15: #{tpu_custom_call.1} parent=1 // pred_check_branch
      %22 = sbr.rel (0) target = $region17
    $region16: #{tpu_custom_call.1} parent=1 // pred_region
      _
    $region17: #{tpu_custom_call.1} parent=1 // pred_fallthru
      _
    // Predicated region
    $region18: #{tpu_custom_call.1} parent=1 // pred_check
      _
    $region19: #{tpu_custom_call.1} parent=1 // pred_check_branch
      %24 = sbr.rel (0) target = $region21
    $region20: #{tpu_custom_call.1} parent=1 // pred_region
      _
    $region21: #{tpu_custom_call.1} parent=1 // pred_fallthru
      _
    // Predicated region
    $region22: #{tpu_custom_call.1} parent=1 // pred_check
      _
    $region23: #{tpu_custom_call.1} parent=1 // pred_check_branch
      %26 = sbr.rel (0) target = $region25
    $region24: #{tpu_custom_call.1} parent=1 // pred_region
      _
    $region25: #{tpu_custom_call.1} parent=1 // pred_fallthru
      _
    // Predicated region
    $region26: #{tpu_custom_call.1} parent=1 // pred_check
      _
    $region27: #{tpu_custom_call.1} parent=1 // pred_check_branch
      %28 = sbr.rel (0) target = $region29
    $region28: #{tpu_custom_call.1} parent=1 // pred_region
      _
    $region29: #{tpu_custom_call.1} parent=1 // pred_fallthru
      _
    // Predicated region
    $region30: #{tpu_custom_call.1} parent=1 // pred_check
      _
    $region31: #{tpu_custom_call.1} parent=1 // pred_check_branch
      %30 = sbr.rel (0) target = $region33
    $region32: #{tpu_custom_call.1} parent=1 // pred_region
      _
    $region33: #{tpu_custom_call.1} parent=1 // pred_fallthru
      _
    // Predicated region
    $region34: #{tpu_custom_call.1} parent=1 // pred_check
      _
    $region35: #{tpu_custom_call.1} parent=1 // pred_check_branch
      %32 = sbr.rel (0) target = $region37
    $region36: #{tpu_custom_call.1} parent=1 // pred_region
      _
    $region37: #{tpu_custom_call.1} parent=1 // pred_fallthru
      _
    %p33 = scmp.eq.s32.totalorder 0, 0
    // Predicated region
    $region38: #{tpu_custom_call.1} parent=1 // pred_check
      %p34 = pneg %p33
    $region39: #{tpu_custom_call.1} parent=1 // pred_check_branch
      %36 = sbr.rel (%p34) target = $region41
    $region40: #{tpu_custom_call.1} parent=1 // pred_region
      %37 = vst [vmem:[#allocation2] sm:$0x3] 0.0
      %38 = vst [vmem:[#allocation3] sm:$0x3] 0.0
    $region41: #{tpu_custom_call.1} parent=1 // pred_fallthru
      _
    %v39 = vld [vmem:[#allocation2] sm:$0x3]
    %v40 = vld [vmem:[%s0] sm:$0x3]
    %v41 = vld [vmem:[%s0 + $0x2] sm:$0x3]
    %vm42 = vcmask 1041408
    %v43 = vsel %vm42, %v40, 0.0
    %v44 = vrot.slane %v43, 4
    %v45 = vadd.f32 %v43, %v44
    %v46 = vrot.slane %v45, 2
    %v47 = vadd.f32 %v45, %v46
    %v48 = vrot.slane %v47, 1
    %v49 = vadd.f32 %v47, %v48
    %v50 = vsel %vm42, %v41, 0.0
    %v51 = vrot.slane %v50, 4
    %v52 = vadd.f32 %v50, %v51
    %v53 = vrot.slane %v52, 2
    %v54 = vadd.f32 %v52, %v53
    %v55 = vrot.slane %v54, 1
    %v56 = vadd.f32 %v54, %v55
    %vm59 = vcmask 1041409
    %v60 = vsel %vm59, %v56, %v49
    %v62 = vadd.f32 %v39, %v60
    %63 = vst [vmem:[#allocation2] sm:$0x3] %v62
    %v64 = vld [vmem:[#allocation3] sm:$0x3]
    %v65 = vld [vmem:[%s1] sm:$0x3]
    %v66 = vld [vmem:[%s1 + $0x2] sm:$0x3]
    %v67 = vsel %vm42, %v65, 0.0
    %v68 = vrot.slane %v67, 4
    %v69 = vadd.f32 %v67, %v68
    %v70 = vrot.slane %v69, 2
    %v71 = vadd.f32 %v69, %v70
    %v72 = vrot.slane %v71, 1
    %v73 = vadd.f32 %v71, %v72
    %v74 = vsel %vm42, %v66, 0.0
    %v75 = vrot.slane %v74, 4
    %v76 = vadd.f32 %v74, %v75
    %v77 = vrot.slane %v76, 2
    %v78 = vadd.f32 %v76, %v77
    %v79 = vrot.slane %v78, 1
    %v80 = vadd.f32 %v78, %v79
    %v83 = vsel %vm59, %v80, %v73
    %v85 = vadd.f32 %v64, %v83
    %86 = vst [vmem:[#allocation3] sm:$0x3] %v85
    // Predicated region
    $region42: #{tpu_custom_call.1} parent=1 // pred_check
      %p87 = pneg %p33
    $region43: #{tpu_custom_call.1} parent=1 // pred_check_branch
      %89 = sbr.rel (%p87) target = $region45
    $region44: #{tpu_custom_call.1} parent=1 // pred_region
      %v90 = vld [vmem:[#allocation2] sm:$0x3]
      %v91 = vld [vmem:[%s2] sm:$0xff]
      %v92 = vld [vmem:[%s2 + $0x8] sm:$0xff]
      %v93 = vld [vmem:[%s2 + $0x10] sm:$0xff]
      %v94 = vld [vmem:[%s2 + $0x18] sm:$0xff]
      %v95 = vld [vmem:[%s2 + $0x20] sm:$0xff]
      %v96 = vld [vmem:[%s2 + $0x28] sm:$0xff]
      %v97 = vld [vmem:[%s2 + $0x30] sm:$0xff]
      %v98 = vld [vmem:[%s2 + $0x38] sm:$0xff]
      %v99 = vld [vmem:[%s2 + $0x40] sm:$0xff]
      %v100 = vld [vmem:[%s2 + $0x48] sm:$0xff]
      %v101 = vld [vmem:[%s2 + $0x50] sm:$0xff]
      %v102 = vld [vmem:[%s2 + $0x58] sm:$0xff]
      %v103 = vld [vmem:[%s2 + $0x60] sm:$0xff]
      %v104 = vld [vmem:[%s2 + $0x68] sm:$0xff]
      %v105 = vld [vmem:[%s2 + $0x70] sm:$0xff]
      %v106 = vld [vmem:[%s2 + $0x78] sm:$0xff]
      %v107 = vld [vmem:[#allocation3] sm:$0x3]
      %v108 = vld [vmem:[%s3] sm:$0xff]
      %v109 = vld [vmem:[%s3 + $0x8] sm:$0xff]
      %v110 = vld [vmem:[%s3 + $0x10] sm:$0xff]
      %v111 = vld [vmem:[%s3 + $0x18] sm:$0xff]
      %v112 = vld [vmem:[%s3 + $0x20] sm:$0xff]
      %v113 = vld [vmem:[%s3 + $0x28] sm:$0xff]
      %v114 = vld [vmem:[%s3 + $0x30] sm:$0xff]
      %v115 = vld [vmem:[%s3 + $0x38] sm:$0xff]
      %v116 = vld [vmem:[%s3 + $0x40] sm:$0xff]
      %v117 = vld [vmem:[%s3 + $0x48] sm:$0xff]
      %v118 = vld [vmem:[%s3 + $0x50] sm:$0xff]
      %v119 = vld [vmem:[%s3 + $0x58] sm:$0xff]
      %v120 = vld [vmem:[%s3 + $0x60] sm:$0xff]
      %v121 = vld [vmem:[%s3 + $0x68] sm:$0xff]
      %v122 = vld [vmem:[%s3 + $0x70] sm:$0xff]
      %v123 = vld [vmem:[%s3 + $0x78] sm:$0xff]
      %124 = vmatprep.subr.mxu0 0.0
      %125 = vmatpush1.msra.mxu0 %v123
      %126 = vmatprep.subr.mxu0 0.0
      %127 = vmatpush1.msra.mxu0 %v122
      %128 = vmatprep.subr.mxu0 0.0
      %129 = vmatpush1.msra.mxu0 %v121
      %130 = vmatprep.subr.mxu0 0.0
      %131 = vmatpush1.msra.mxu0 %v120
      %132 = vmatprep.subr.mxu0 0.0
      %133 = vmatpush1.msra.mxu0 %v119
      %134 = vmatprep.subr.mxu0 0.0
      %135 = vmatpush1.msra.mxu0 %v118
      %136 = vmatprep.subr.mxu0 0.0
      %137 = vmatpush1.msra.mxu0 %v117
      %138 = vmatprep.subr.mxu0 0.0
      %139 = vmatpush1.msra.mxu0 %v116
      %140 = vmatprep.subr.mxu0 0.0
      %141 = vmatpush1.msra.mxu0 %v115
      %142 = vmatprep.subr.mxu0 0.0
      %143 = vmatpush1.msra.mxu0 %v114
      %144 = vmatprep.subr.mxu0 0.0
      %145 = vmatpush1.msra.mxu0 %v113
      %146 = vmatprep.subr.mxu0 0.0
      %147 = vmatpush1.msra.mxu0 %v112
      %148 = vmatprep.subr.mxu0 0.0
      %149 = vmatpush1.msra.mxu0 %v111
      %150 = vmatprep.subr.mxu0 0.0
      %151 = vmatpush1.msra.mxu0 %v110
      %152 = vmatprep.subr.mxu0 0.0
      %153 = vmatpush1.msra.mxu0 %v109
      %154 = vmatprep.subr.mxu0 0.0
      %155 = vmatpush1.msra.mxu0 %v108
      %156 = vmatprep.subr.mxu0 0.0
      %157 = vmatpush2.msra.mxu0 0.0
      %158 = vmatprep.subr.mxu0 0.0
      %159 = vmatpush2.msra.mxu0 0.0
      %160 = vmatprep.subr.mxu0 0.0
      %161 = vmatpush2.msra.mxu0 0.0
      %162 = vmatprep.subr.mxu0 0.0
      %163 = vmatpush2.msra.mxu0 0.0
      %164 = vmatprep.subr.mxu0 0.0
      %165 = vmatpush2.msra.mxu0 0.0
      %166 = vmatprep.subr.mxu0 0.0
      %167 = vmatpush2.msra.mxu0 0.0
      %168 = vmatprep.subr.mxu0 0.0
      %169 = vmatpush2.msra.mxu0 0.0
      %170 = vmatprep.subr.mxu0 0.0
      %171 = vmatpush2.msra.mxu0 0.0
      %172 = vmatprep.subr.mxu0 0.0
      %173 = vmatpush2.msra.mxu0 0.0
      %174 = vmatprep.subr.mxu0 0.0
      %175 = vmatpush2.msra.mxu0 0.0
      %176 = vmatprep.subr.mxu0 0.0
      %177 = vmatpush2.msra.mxu0 0.0
      %178 = vmatprep.subr.mxu0 0.0
      %179 = vmatpush2.msra.mxu0 0.0
      %180 = vmatprep.subr.mxu0 0.0
      %181 = vmatpush2.msra.mxu0 0.0
      %182 = vmatprep.subr.mxu0 0.0
      %183 = vmatpush2.msra.mxu0 0.0
      %184 = vmatprep.subr.mxu0 0.0
      %185 = vmatpush2.msra.mxu0 0.0
      %186 = vmatprep.subr.mxu0 0.0
      %187 = vmatpush2.msra.mxu0 0.0
      %188 = vmatprep.mubr.f32.mxu0 0.0
      %189 = vmatmul.mubr.f32.gmra.mxu0 %v107
      %v190 = vpop.f32.mrf.mxu0
      %v191 = vadd.f32 0.0, %v190
      %v192 = vpop.f32.mrf.mxu0
      %193 = vdwg.mxu0
      %194 = vmatprep.subr.mxu0 0.0
      %195 = vmatpush1.msra.mxu0 %v106
      %196 = vmatprep.subr.mxu0 0.0
      %197 = vmatpush1.msra.mxu0 %v105
      %198 = vmatprep.subr.mxu0 0.0
      %199 = vmatpush1.msra.mxu0 %v104
      %200 = vmatprep.subr.mxu0 0.0
      %201 = vmatpush1.msra.mxu0 %v103
      %202 = vmatprep.subr.mxu0 0.0
      %203 = vmatpush1.msra.mxu0 %v102
      %204 = vmatprep.subr.mxu0 0.0
      %205 = vmatpush1.msra.mxu0 %v101
      %206 = vmatprep.subr.mxu0 0.0
      %207 = vmatpush1.msra.mxu0 %v100
      %208 = vmatprep.subr.mxu0 0.0
      %209 = vmatpush1.msra.mxu0 %v99
      %210 = vmatprep.subr.mxu0 0.0
      %211 = vmatpush1.msra.mxu0 %v98
      %212 = vmatprep.subr.mxu0 0.0
      %213 = vmatpush1.msra.mxu0 %v97
      %214 = vmatprep.subr.mxu0 0.0
      %215 = vmatpush1.msra.mxu0 %v96
      %216 = vmatprep.subr.mxu0 0.0
      %217 = vmatpush1.msra.mxu0 %v95
      %218 = vmatprep.subr.mxu0 0.0
      %219 = vmatpush1.msra.mxu0 %v94
      %220 = vmatprep.subr.mxu0 0.0
      %221 = vmatpush1.msra.mxu0 %v93
      %222 = vmatprep.subr.mxu0 0.0
      %223 = vmatpush1.msra.mxu0 %v92
      %224 = vmatprep.subr.mxu0 0.0
      %225 = vmatpush1.msra.mxu0 %v91
      %226 = vmatprep.subr.mxu0 0.0
      %227 = vmatpush2.msra.mxu0 0.0
      %228 = vmatprep.subr.mxu0 0.0
      %229 = vmatpush2.msra.mxu0 0.0
      %230 = vmatprep.subr.mxu0 0.0
      %231 = vmatpush2.msra.mxu0 0.0
      %232 = vmatprep.subr.mxu0 0.0
      %233 = vmatpush2.msra.mxu0 0.0
      %234 = vmatprep.subr.mxu0 0.0
      %235 = vmatpush2.msra.mxu0 0.0
      %236 = vmatprep.subr.mxu0 0.0
      %237 = vmatpush2.msra.mxu0 0.0
      %238 = vmatprep.subr.mxu0 0.0
      %239 = vmatpush2.msra.mxu0 0.0
      %240 = vmatprep.subr.mxu0 0.0
      %241 = vmatpush2.msra.mxu0 0.0
      %242 = vmatprep.subr.mxu0 0.0
      %243 = vmatpush2.msra.mxu0 0.0
      %244 = vmatprep.subr.mxu0 0.0
      %245 = vmatpush2.msra.mxu0 0.0
      %246 = vmatprep.subr.mxu0 0.0
      %247 = vmatpush2.msra.mxu0 0.0
      %248 = vmatprep.subr.mxu0 0.0
      %249 = vmatpush2.msra.mxu0 0.0
      %250 = vmatprep.subr.mxu0 0.0
      %251 = vmatpush2.msra.mxu0 0.0
      %252 = vmatprep.subr.mxu0 0.0
      %253 = vmatpush2.msra.mxu0 0.0
      %254 = vmatprep.subr.mxu0 0.0
      %255 = vmatpush2.msra.mxu0 0.0
      %256 = vmatprep.subr.mxu0 0.0
      %257 = vmatpush2.msra.mxu0 0.0
      %258 = vmatprep.mubr.f32.mxu0 0.0
      %259 = vmatmul.mubr.f32.gmra.mxu0 %v90
      %v260 = vpop.f32.mrf.mxu0
      %v261 = vadd.f32 %v191, %v260
      %v262 = vpop.f32.mrf.mxu0
      %263 = vdwg.mxu0
      %v264 = vld [vmem:[%s4] sm:$0x1]
      %v266 = vlaneseq
      %v267 = vshrl.u32 %v266, 7
      %v268 = vsub.s32 0, %v267
      %v269 = vrot.slane %v264, %v268
      %v271 = vadd.f32 %v261, %v269
      %v272 = vmax.f32 %v271, 0.0
      %v273 = vld [vmem:[%s5] sm:$0xff]
      %v274 = vld [vmem:[%s5 + $0x8] sm:$0xff]
      %v275 = vld [vmem:[%s5 + $0x10] sm:$0xff]
      %v276 = vld [vmem:[%s5 + $0x18] sm:$0xff]
      %v277 = vld [vmem:[%s6] sm:$0x1]
      %v279 = vlaneseq
      %v280 = vshrl.u32 %v279, 7
      %v281 = vsub.s32 0, %v280
      %v282 = vrot.slane %v277, %v281
      %vm284 = vcmask 261120
      %v286 = vsel %vm284, %v272, 0
      %288 = vmatprep.subr.mxu0 0.0
      %289 = vmatpush1.msra.mxu0 0.0
      %290 = vmatprep.subr.mxu0 0.0
      %291 = vmatpush1.msra.mxu0 0.0
      %292 = vmatprep.subr.mxu0 0.0
      %293 = vmatpush1.msra.mxu0 0.0
      %294 = vmatprep.subr.mxu0 0.0
      %295 = vmatpush1.msra.mxu0 0.0
      %296 = vmatprep.subr.mxu0 0.0
      %297 = vmatpush1.msra.mxu0 0.0
      %298 = vmatprep.subr.mxu0 0.0
      %299 = vmatpush1.msra.mxu0 0.0
      %300 = vmatprep.subr.mxu0 0.0
      %301 = vmatpush1.msra.mxu0 0.0
      %302 = vmatprep.subr.mxu0 0.0
      %303 = vmatpush1.msra.mxu0 0.0
      %304 = vmatprep.subr.mxu0 0.0
      %305 = vmatpush1.msra.mxu0 0.0
      %306 = vmatprep.subr.mxu0 0.0
      %307 = vmatpush1.msra.mxu0 0.0
      %308 = vmatprep.subr.mxu0 0.0
      %309 = vmatpush1.msra.mxu0 0.0
      %310 = vmatprep.subr.mxu0 0.0
      %311 = vmatpush1.msra.mxu0 0.0
      %312 = vmatprep.subr.mxu0 0.0
      %313 = vmatpush1.msra.mxu0 %v276
      %314 = vmatprep.subr.mxu0 0.0
      %315 = vmatpush1.msra.mxu0 %v275
      %316 = vmatprep.subr.mxu0 0.0
      %317 = vmatpush1.msra.mxu0 %v274
      %318 = vmatprep.subr.mxu0 0.0
      %319 = vmatpush1.msra.mxu0 %v273
      %320 = vmatprep.subr.mxu0 0.0
      %321 = vmatpush2.msra.mxu0 0.0
      %322 = vmatprep.subr.mxu0 0.0
      %323 = vmatpush2.msra.mxu0 0.0
      %324 = vmatprep.subr.mxu0 0.0
      %325 = vmatpush2.msra.mxu0 0.0
      %326 = vmatprep.subr.mxu0 0.0
      %327 = vmatpush2.msra.mxu0 0.0
      %328 = vmatprep.subr.mxu0 0.0
      %329 = vmatpush2.msra.mxu0 0.0
      %330 = vmatprep.subr.mxu0 0.0
      %331 = vmatpush2.msra.mxu0 0.0
      %332 = vmatprep.subr.mxu0 0.0
      %333 = vmatpush2.msra.mxu0 0.0
      %334 = vmatprep.subr.mxu0 0.0
      %335 = vmatpush2.msra.mxu0 0.0
      %336 = vmatprep.subr.mxu0 0.0
      %337 = vmatpush2.msra.mxu0 0.0
      %338 = vmatprep.subr.mxu0 0.0
      %339 = vmatpush2.msra.mxu0 0.0
      %340 = vmatprep.subr.mxu0 0.0
      %341 = vmatpush2.msra.mxu0 0.0
      %342 = vmatprep.subr.mxu0 0.0
      %343 = vmatpush2.msra.mxu0 0.0
      %344 = vmatprep.subr.mxu0 0.0
      %345 = vmatpush2.msra.mxu0 0.0
      %346 = vmatprep.subr.mxu0 0.0
      %347 = vmatpush2.msra.mxu0 0.0
      %348 = vmatprep.subr.mxu0 0.0
      %349 = vmatpush2.msra.mxu0 0.0
      %350 = vmatprep.subr.mxu0 0.0
      %351 = vmatpush2.msra.mxu0 0.0
      %352 = vmatprep.mubr.f32.mxu0 0.0
      %353 = vmatmul.mubr.f32.gmra.mxu0 %v286
      %v354 = vpop.f32.mrf.mxu0
      %v355 = vadd.f32 %v282, %v354
      %v356 = vpop.f32.mrf.mxu0
      %357 = vdwg.mxu0
      %v358 = vmax.f32 %v355, 0.0
      %v359 = vld [vmem:[%s7] sm:$0xff]
      %v360 = vld [vmem:[%s7 + $0x8] sm:$0xff]
      %v361 = vld [vmem:[%s7 + $0x10] sm:$0xff]
      %v362 = vld [vmem:[%s7 + $0x18] sm:$0xff]
      %v363 = vld [vmem:[%s8] sm:$0x1]
      %v365 = vlaneseq
      %v366 = vshrl.u32 %v365, 7
      %v367 = vsub.s32 0, %v366
      %v368 = vrot.slane %v363, %v367
      %v371 = vsel %vm284, %v358, 0
      %373 = vmatprep.subr.mxu0 0.0
      %374 = vmatpush1.msra.mxu0 0.0
      %375 = vmatprep.subr.mxu0 0.0
      %376 = vmatpush1.msra.mxu0 0.0
      %377 = vmatprep.subr.mxu0 0.0
      %378 = vmatpush1.msra.mxu0 0.0
      %379 = vmatprep.subr.mxu0 0.0
      %380 = vmatpush1.msra.mxu0 0.0
      %381 = vmatprep.subr.mxu0 0.0
      %382 = vmatpush1.msra.mxu0 0.0
      %383 = vmatprep.subr.mxu0 0.0
      %384 = vmatpush1.msra.mxu0 0.0
      %385 = vmatprep.subr.mxu0 0.0
      %386 = vmatpush1.msra.mxu0 0.0
      %387 = vmatprep.subr.mxu0 0.0
      %388 = vmatpush1.msra.mxu0 0.0
      %389 = vmatprep.subr.mxu0 0.0
      %390 = vmatpush1.msra.mxu0 0.0
      %391 = vmatprep.subr.mxu0 0.0
      %392 = vmatpush1.msra.mxu0 0.0
      %393 = vmatprep.subr.mxu0 0.0
      %394 = vmatpush1.msra.mxu0 0.0
      %395 = vmatprep.subr.mxu0 0.0
      %396 = vmatpush1.msra.mxu0 0.0
      %397 = vmatprep.subr.mxu0 0.0
      %398 = vmatpush1.msra.mxu0 %v362
      %399 = vmatprep.subr.mxu0 0.0
      %400 = vmatpush1.msra.mxu0 %v361
      %401 = vmatprep.subr.mxu0 0.0
      %402 = vmatpush1.msra.mxu0 %v360
      %403 = vmatprep.subr.mxu0 0.0
      %404 = vmatpush1.msra.mxu0 %v359
      %405 = vmatprep.subr.mxu0 0.0
      %406 = vmatpush2.msra.mxu0 0.0
      %407 = vmatprep.subr.mxu0 0.0
      %408 = vmatpush2.msra.mxu0 0.0
      %409 = vmatprep.subr.mxu0 0.0
      %410 = vmatpush2.msra.mxu0 0.0
      %411 = vmatprep.subr.mxu0 0.0
      %412 = vmatpush2.msra.mxu0 0.0
      %413 = vmatprep.subr.mxu0 0.0
      %414 = vmatpush2.msra.mxu0 0.0
      %415 = vmatprep.subr.mxu0 0.0
      %416 = vmatpush2.msra.mxu0 0.0
      %417 = vmatprep.subr.mxu0 0.0
      %418 = vmatpush2.msra.mxu0 0.0
      %419 = vmatprep.subr.mxu0 0.0
      %420 = vmatpush2.msra.mxu0 0.0
      %421 = vmatprep.subr.mxu0 0.0
      %422 = vmatpush2.msra.mxu0 0.0
      %423 = vmatprep.subr.mxu0 0.0
      %424 = vmatpush2.msra.mxu0 0.0
      %425 = vmatprep.subr.mxu0 0.0
      %426 = vmatpush2.msra.mxu0 0.0
      %427 = vmatprep.subr.mxu0 0.0
      %428 = vmatpush2.msra.mxu0 0.0
      %429 = vmatprep.subr.mxu0 0.0
      %430 = vmatpush2.msra.mxu0 0.0
      %431 = vmatprep.subr.mxu0 0.0
      %432 = vmatpush2.msra.mxu0 0.0
      %433 = vmatprep.subr.mxu0 0.0
      %434 = vmatpush2.msra.mxu0 0.0
      %435 = vmatprep.subr.mxu0 0.0
      %436 = vmatpush2.msra.mxu0 0.0
      %437 = vmatprep.mubr.f32.mxu0 0.0
      %438 = vmatmul.mubr.f32.gmra.mxu0 %v371
      %v439 = vpop.f32.mrf.mxu0
      %v440 = vadd.f32 %v368, %v439
      %v441 = vpop.f32.mrf.mxu0
      %442 = vdwg.mxu0
      %vm443 = vcmask 17408
      %444 = vst.msk [vmem:[#allocation4] sm:$0x3] %vm443, %v440
    $region45: #{tpu_custom_call.1} parent=1 // pred_fallthru
      _
    // Predicated region
    $region46: #{tpu_custom_call.1} parent=1 // pred_check
      _
    $region47: #{tpu_custom_call.1} parent=1 // pred_check_branch
      %446 = sbr.rel (0) target = $region49
    $region48: #{tpu_custom_call.1} parent=1 // pred_region
      %s448 = ssub.s32 32, 32
      %449 = vsyncadd [#allocation5], %s448
      %s451 = sshll.u32 [#allocation4], 4
      %s452 = int_to_ptr.vmem [resolvable:$true] %s451
      %454 = dma.vmem_to_hbm [thread:$0]  %s452, 32, %s9, [#allocation5]
    $region49: #{tpu_custom_call.1} parent=1 // pred_fallthru
      _
    // Predicated region
    $region50: #{tpu_custom_call.1} parent=1 // pred_check
      _
    $region51: #{tpu_custom_call.1} parent=1 // pred_check_branch
      %456 = sbr.rel (0) target = $region53
    $region52: #{tpu_custom_call.1} parent=1 // pred_region
      %457 = dma.done [#allocation5], 32
    $region53: #{tpu_custom_call.1} parent=1 // pred_fallthru
      _
    %458 = vsyncpa [#allocation5], 1

</llo_original>
